<compile_context>
chip_gen: v6e
topology: v6e:2x2x1
jax: 0.10.0
libtpu: 0.0.40
codegen_flags: <defaults>
</compile_context>

<pallas_src>
import functools

import jax
import jax.numpy as jnp
from jax.experimental import pallas as pl
from jax.experimental.pallas import tpu as pltpu

_LANE = 128          # lane width (last dim) — layout floor for feature dims
_SUBLANE = 8         # f32 sublane count
_BATCH_TILE = 256    # rows per MXU pass once the batch is large (v6e/v7x)


def _round_up(n, m):
    return ((n + m - 1) // m) * m


def _apply_act(y, activation):
    if activation is None:
        return y
    if activation == "tanh":
        return jnp.tanh(y)                                   # EUP slot
    if activation == "relu":
        return jnp.maximum(y, 0.0)
    if activation == "gelu":
        return jax.nn.gelu(y, approximate=False)             # exact erf (torch default)
    if activation == "elu":
        # clamp the expm1 argument so EUP never sees huge positives
        return jnp.where(y > 0, y, jnp.expm1(jnp.minimum(y, 0.0)))
    if activation == "leakyrelu":
        return jnp.where(y > 0, y, 0.01 * y)
    raise ValueError(f"unknown activation: {activation}")


def _fused_mlp_kernel(x_ref, bias_ref, *w_and_out, num_layers, activation,
                      out_pads, out_dim):
    """refs = (x_ref, packed_bias_ref, w0, ..., w_{L-1}, o_ref).

    The whole layer chain is unrolled; intermediates never leave vregs/VMEM.
    """
    w_refs = w_and_out[:num_layers]
    o_ref = w_and_out[num_layers]

    h = x_ref[...]                                            # (TB, in_pad) f32
    for i in range(num_layers):
        w = w_refs[i][...]                                    # (in_pad_i, out_pad_i) bf16
        b = bias_ref[i:i + 1, :out_pads[i]]                   # (1, out_pad_i) f32 (static slice)
        y = jnp.dot(h.astype(w.dtype), w,                     # bf16 MXU, f32 accumulate
                    preferred_element_type=jnp.float32)
        h = _apply_act(y + b, activation)                     # VPU / EUP, f32
    o_ref[...] = h[:, :out_dim].astype(o_ref.dtype)           # drop padded lanes in-kernel


def init_basicnet_params(key, dimensions, indim, outdim):
    """Deterministic init mirroring BasicNet.__init__ layer shapes (W stored (in, out))."""
    in_dims = [indim] + list(dimensions)
    out_dims = list(dimensions) + [outdim]
    params = []
    for i, (din, dout) in enumerate(zip(in_dims, out_dims)):
        kw, kb, key = jax.random.split(jax.random.fold_in(key, i), 3)
        bound = 1.0 / (din ** 0.5)  # PyTorch-Linear-style uniform bound
        w = jax.random.uniform(kw, (din, dout), jnp.float32, -bound, bound)
        b = jax.random.uniform(kb, (dout,), jnp.float32, -bound, bound)
        params.append((w, b))
    return params


def prepare_basicnet_params(params, mxu_dtype=jnp.bfloat16):
    """One-time (init-time) padding / packing / bf16 cast of the parameters.

    Returns a dict consumed by `basicnet_forward`.  Doing this here (instead of
    per forward call) removes 2L+1 XLA pad ops from the dispatch-bound hot path.
    """
    out_dims = [w.shape[1] for w, _ in params]
    indim = params[0][0].shape[0]
    outdim = out_dims[-1]

    in_pad0 = max(_LANE, _round_up(indim, _LANE))
    out_pads = [max(_LANE, _round_up(d, _LANE)) for d in out_dims]
    in_pads = [in_pad0] + out_pads[:-1]

    weights = []
    for (w, _), ip, op in zip(params, in_pads, out_pads):
        din, dout = w.shape
        wp = jnp.zeros((ip, op), mxu_dtype).at[:din, :dout].set(w.astype(mxu_dtype))
        weights.append(wp)

    max_op = max(out_pads)
    bias = jnp.zeros((len(params), max_op), jnp.float32)
    for i, (_, b) in enumerate(params):
        bias = bias.at[i, : b.shape[0]].set(b)

    return {
        "weights": tuple(weights),   # bf16, zero-padded to lane-dense (in_pad, out_pad)
        "bias": bias,                # f32, packed (L, max_out_pad)
        "out_pads": tuple(out_pads),
        "in_pad": in_pad0,
        "indim": indim,
        "outdim": outdim,
    }


def basicnet_forward(x, prepared, activation="tanh"):
    """Fused forward pass: activation after EVERY layer, matching BasicNet.forward.

    x: (B, indim) f32.  `prepared` comes from `prepare_basicnet_params`.
    """
    B, indim = x.shape
    assert indim == prepared["indim"]
    weights = prepared["weights"]
    bias = prepared["bias"]
    out_pads = prepared["out_pads"]
    out_dim = prepared["outdim"]
    in_pad = prepared["in_pad"]
    num_layers = len(weights)

    # Batch tile: 256 rows/pass at realistic batches (fills v6e/v7x MXU rows and
    # gives the "parallel" axis something to shard across v7x's 2 TensorCores);
    # sublane-minimum 8 for tiny batches.
    tb = _BATCH_TILE if B >= _BATCH_TILE else max(_SUBLANE, _round_up(B, _SUBLANE))
    b_pad = _round_up(B, tb)
    if b_pad != B or in_pad != indim:
        x_p = jnp.zeros((b_pad, in_pad), jnp.float32).at[:B, :indim].set(x)
    else:
        x_p = x

    grid = (b_pad // tb,)
    in_specs = [
        pl.BlockSpec((tb, in_pad), lambda i: (i, 0)),              # batch tile of x
        pl.BlockSpec(bias.shape, lambda i: (0, 0)),                # packed biases (resident)
    ] + [
        pl.BlockSpec(w.shape, lambda i: (0, 0)) for w in weights   # weights resident in VMEM
    ]
    out_specs = pl.BlockSpec((tb, out_dim), lambda i: (i, 0))

    # Re-derive the VMEM budget (all weights resident + pipelined x/out tiles);
    # raise the scoped limit only when needed, capped below v7x's 64 MiB physical.
    weight_bytes = sum(int(w.size) * w.dtype.itemsize for w in weights)
    act_bytes = 4 * tb * (in_pad + max(out_pads) + out_dim) * 4
    needed = weight_bytes + int(bias.size) * bias.dtype.itemsize + act_bytes
    vmem_limit = None
    if needed > (24 << 20):
        vmem_limit = min(_round_up(needed * 2, 1 << 20), 56 << 20)

    kernel = functools.partial(
        _fused_mlp_kernel,
        num_layers=num_layers,
        activation=activation,
        out_pads=out_pads,
        out_dim=out_dim,
    )

    out_p = pl.pallas_call(
        kernel,
        out_shape=jax.ShapeDtypeStruct((b_pad, out_dim), jnp.float32),
        grid=grid,
        in_specs=in_specs,
        out_specs=out_specs,
        compiler_params=pltpu.CompilerParams(
            dimension_semantics=("parallel",),
            vmem_limit_bytes=vmem_limit,
        ),
    )(x_p, bias, *weights)

    return out_p if b_pad == B else out_p[:B]


if __name__ == "__main__":
    key = jax.random.PRNGKey(0)

    batch = 4
    indim, outdim = 8, 8
    dimensions = [32, 32]
    activation = "tanh"

    kx, kp = jax.random.split(key)
    x = jax.random.normal(kx, (batch, indim), jnp.float32)
    params = init_basicnet_params(kp, dimensions, indim, outdim)
    prepared = prepare_basicnet_params(params)   # one-time padding / packing / bf16 cast

    out = jax.block_until_ready(basicnet_forward(x, prepared, activation))
    assert out.shape == (batch, outdim)

    # Reference 1: same bf16-MXU / f32-accumulate math in pure JAX (tight check).
    ref_bf16 = x
    for w, b in params:
        ref_bf16 = jnp.tanh(
            jnp.dot(ref_bf16.astype(jnp.bfloat16), w.astype(jnp.bfloat16),
                    preferred_element_type=jnp.float32) + b)
    assert jnp.allclose(out, ref_bf16, atol=1e-4, rtol=1e-4)

    # Reference 2: full-f32 math (tolerance sized for the deliberate bf16 MXU inputs).
    ref_f32 = x
    for w, b in params:
        ref_f32 = jnp.tanh(ref_f32 @ w + b)
    assert jnp.allclose(out, ref_f32, atol=3e-2, rtol=3e-2)

    print("KERNEL_OK")
</pallas_src>

<mosaic_0001>
module attributes {stable_mosaic.version = 11 : i64} {
  func.func @_fused_mlp_kernel(%arg0: i32, %arg1: memref<8x128xf32, #tpu.memory_space<vmem>>, %arg2: memref<3x128xf32, #tpu.memory_space<vmem>>, %arg3: memref<128x128xbf16, #tpu.memory_space<vmem>>, %arg4: memref<128x128xbf16, #tpu.memory_space<vmem>>, %arg5: memref<128x128xbf16, #tpu.memory_space<vmem>>, %arg6: memref<8x8xf32, #tpu.memory_space<vmem>>) attributes {dimension_semantics = [#tpu.dimension_semantics<parallel>], iteration_bounds = array<i64: 1>, scalar_prefetch = 0 : i64, scratch_operands = 0 : i64, tpu.core_type = #tpu.core_type<tc>, window_params = [{transform_indices = @transform_0, window_bounds = array<i64: 8, 128>}, {pipeline_mode = #tpu.pipeline_mode<synchronous>, transform_indices = @transform_1, window_bounds = array<i64: 3, 128>}, {pipeline_mode = #tpu.pipeline_mode<synchronous>, transform_indices = @transform_2, window_bounds = array<i64: 128, 128>}, {pipeline_mode = #tpu.pipeline_mode<synchronous>, transform_indices = @transform_3, window_bounds = array<i64: 128, 128>}, {pipeline_mode = #tpu.pipeline_mode<synchronous>, transform_indices = @transform_4, window_bounds = array<i64: 128, 128>}, {transform_indices = @transform_5, window_bounds = array<i64: 8, 8>}]} {
    %c0 = arith.constant 0 : index
    %c0_0 = arith.constant 0 : index
    %0 = vector.load %arg1[%c0, %c0_0] : memref<8x128xf32, #tpu.memory_space<vmem>>, vector<8x128xf32>
    %c0_1 = arith.constant 0 : index
    %c0_2 = arith.constant 0 : index
    %1 = vector.load %arg3[%c0_1, %c0_2] : memref<128x128xbf16, #tpu.memory_space<vmem>>, vector<128x128xbf16>
    %c0_3 = arith.constant 0 : index
    %c0_4 = arith.constant 0 : index
    %2 = vector.load %arg2[%c0_3, %c0_4] : memref<3x128xf32, #tpu.memory_space<vmem>>, vector<1x128xf32>
    %3 = arith.truncf %0 : vector<8x128xf32> to vector<8x128xbf16>
    %cst = arith.constant dense<0.000000e+00> : vector<8x128xf32>
    %4 = tpu.matmul %3, %1, %cst {dimension_numbers = #tpu.dot_dimension_numbers<[1], [0], [0], [1], [0, 0, 1, 1], [], []>} : vector<8x128xbf16>, vector<128x128xbf16>, vector<8x128xf32> -> vector<8x128xf32>
    %5 = vector.broadcast %2 : vector<1x128xf32> to vector<8x128xf32>
    %6 = arith.addf %4, %5 : vector<8x128xf32>
    %7 = math.tanh %6 : vector<8x128xf32>
    %c0_5 = arith.constant 0 : index
    %c0_6 = arith.constant 0 : index
    %8 = vector.load %arg4[%c0_5, %c0_6] : memref<128x128xbf16, #tpu.memory_space<vmem>>, vector<128x128xbf16>
    %c1 = arith.constant 1 : index
    %c0_7 = arith.constant 0 : index
    %9 = vector.load %arg2[%c1, %c0_7] : memref<3x128xf32, #tpu.memory_space<vmem>>, vector<1x128xf32>
    %10 = arith.truncf %7 : vector<8x128xf32> to vector<8x128xbf16>
    %cst_8 = arith.constant dense<0.000000e+00> : vector<8x128xf32>
    %11 = tpu.matmul %10, %8, %cst_8 {dimension_numbers = #tpu.dot_dimension_numbers<[1], [0], [0], [1], [0, 0, 1, 1], [], []>} : vector<8x128xbf16>, vector<128x128xbf16>, vector<8x128xf32> -> vector<8x128xf32>
    %12 = vector.broadcast %9 : vector<1x128xf32> to vector<8x128xf32>
    %13 = arith.addf %11, %12 : vector<8x128xf32>
    %14 = math.tanh %13 : vector<8x128xf32>
    %c0_9 = arith.constant 0 : index
    %c0_10 = arith.constant 0 : index
    %15 = vector.load %arg5[%c0_9, %c0_10] : memref<128x128xbf16, #tpu.memory_space<vmem>>, vector<128x128xbf16>
    %c2 = arith.constant 2 : index
    %c0_11 = arith.constant 0 : index
    %16 = vector.load %arg2[%c2, %c0_11] : memref<3x128xf32, #tpu.memory_space<vmem>>, vector<1x128xf32>
    %17 = arith.truncf %14 : vector<8x128xf32> to vector<8x128xbf16>
    %cst_12 = arith.constant dense<0.000000e+00> : vector<8x128xf32>
    %18 = tpu.matmul %17, %15, %cst_12 {dimension_numbers = #tpu.dot_dimension_numbers<[1], [0], [0], [1], [0, 0, 1, 1], [], []>} : vector<8x128xbf16>, vector<128x128xbf16>, vector<8x128xf32> -> vector<8x128xf32>
    %19 = vector.broadcast %16 : vector<1x128xf32> to vector<8x128xf32>
    %20 = arith.addf %18, %19 : vector<8x128xf32>
    %21 = math.tanh %20 : vector<8x128xf32>
    %22 = vector.extract_strided_slice %21 {offsets = [0, 0], sizes = [8, 8], strides = [1, 1]} : vector<8x128xf32> to vector<8x8xf32>
    %c0_13 = arith.constant 0 : index
    %c0_14 = arith.constant 0 : index
    %23 = vector.load %arg6[%c0_13, %c0_14] : memref<8x8xf32, #tpu.memory_space<vmem>>, vector<8x8xf32>
    tpu.vector_store %arg6[%c0_13, %c0_14], %22 {strides = array<i32>} : memref<8x8xf32, #tpu.memory_space<vmem>>, vector<8x8xf32>,
    return
  }
  func.func @transform_0(%arg0: i32) -> (i32, i32) {
    %c0_i32 = arith.constant 0 : i32
    %c0_i32_0 = arith.constant 0 : i32
    return %arg0, %c0_i32 : i32, i32
  }
  func.func @transform_1(%arg0: i32) -> (i32, i32) {
    %c0_i32 = arith.constant 0 : i32
    %c0_i32_0 = arith.constant 0 : i32
    %c0_i32_1 = arith.constant 0 : i32
    return %c0_i32, %c0_i32_0 : i32, i32
  }
  func.func @transform_2(%arg0: i32) -> (i32, i32) {
    %c0_i32 = arith.constant 0 : i32
    %c0_i32_0 = arith.constant 0 : i32
    %c0_i32_1 = arith.constant 0 : i32
    return %c0_i32, %c0_i32_0 : i32, i32
  }
  func.func @transform_3(%arg0: i32) -> (i32, i32) {
    %c0_i32 = arith.constant 0 : i32
    %c0_i32_0 = arith.constant 0 : i32
    %c0_i32_1 = arith.constant 0 : i32
    return %c0_i32, %c0_i32_0 : i32, i32
  }
  func.func @transform_4(%arg0: i32) -> (i32, i32) {
    %c0_i32 = arith.constant 0 : i32
    %c0_i32_0 = arith.constant 0 : i32
    %c0_i32_1 = arith.constant 0 : i32
    return %c0_i32, %c0_i32_0 : i32, i32
  }
  func.func @transform_5(%arg0: i32) -> (i32, i32) {
    %c0_i32 = arith.constant 0 : i32
    %c0_i32_0 = arith.constant 0 : i32
    return %arg0, %c0_i32 : i32, i32
  }
}

</mosaic_0001>

<llo_original>
// kernel: tpu_custom_call.1
$region0: #{tpu_custom_call.1}
  #allocation0 [shape = 'u32[]', space=smem, size = 0x4, offset = 0x4, fixed_abs, tag = 'smem constant byte address 0x4 - core index']
  #allocation1 [shape = 'u32[144,128]{1,0:T(1,128)}', space=vmem, size = 0x12000, scoped, tag = 'internal scratch']
  %s0 = inlined_call_operand.hbm [shape: f32[8,128], index: 0, kind: input, shape index: {}]
  %s1 = inlined_call_operand.hbm [shape: f32[3,128], index: 1, kind: input, shape index: {}]
  %s2 = inlined_call_operand.hbm [shape: bf16[128,128], index: 2, kind: input, shape index: {}]
  %s3 = inlined_call_operand.hbm [shape: bf16[128,128], index: 3, kind: input, shape index: {}]
  %s4 = inlined_call_operand.hbm [shape: bf16[128,128], index: 4, kind: input, shape index: {}]
  %s5 = inlined_call_operand.hbm [shape: f32[8,8], index: 5, kind: output, shape index: {}]
  %s6 = sld [smem:[#allocation0]]
  $region50: #{tpu_custom_call.1} parent=0
    _
  %s8 = ssub.s32 1, %s6
  %s9 = scalar_select 0, %s8, %s6
  $region1: #{tpu_custom_call.1} parent=0
    #allocation2 [shape = 'u8[4096]{0}', space=vmem, size = 0x1000, scoped, tag = 'input window, operand 0, single buffered']
    #allocation3 [shape = 's32[1]{0}', space=sflag, size = 0x4, scoped, tag = 'scoped memory for tpu_custom_call.1']
    #allocation4 [shape = 's32[1]{0}', space=sflag, size = 0x4, scoped, tag = 'scoped memory for tpu_custom_call.1']
    #allocation5 [shape = 'u8[2048]{0}', space=vmem, size = 0x800, scoped, tag = 'input window, operand 1, single buffered']
    #allocation6 [shape = 's32[1]{0}', space=sflag, size = 0x4, scoped, tag = 'scoped memory for tpu_custom_call.1']
    #allocation7 [shape = 'u8[32768]{0}', space=vmem, size = 0x8000, scoped, tag = 'input window, operand 2, single buffered']
    #allocation8 [shape = 'u8[32768]{0}', space=vmem, size = 0x8000, scoped, tag = 'input window, operand 3, single buffered']
    #allocation9 [shape = 's32[1]{0}', space=sflag, size = 0x4, scoped, tag = 'scoped memory for tpu_custom_call.1']
    #allocation10 [shape = 'u8[32768]{0}', space=vmem, size = 0x8000, scoped, tag = 'input window, operand 4, single buffered']
    #allocation11 [shape = 'u8[4096]{0}', space=vmem, size = 0x1000, scoped, tag = 'output window, operand 0, single buffered']
    %10 = vsyncpa [#allocation3], 0
    %11 = vsyncpa [#allocation6], 0
    %12 = vsyncpa [#allocation9], 0
    %13 = vsyncpa [#allocation4], 0
    // Predicated region
    $region2: #{tpu_custom_call.1} parent=1 // pred_check
      _
    $region3: #{tpu_custom_call.1} parent=1 // pred_check_branch
      %15 = sbr.rel (0) target = $region5
    $region4: #{tpu_custom_call.1} parent=1 // pred_region
      %s17 = ssub.s32 128, 128
      %18 = vsyncadd [#allocation3], %s17
      %s20 = sshll.u32 [#allocation2], 4
      %s21 = int_to_ptr.vmem [resolvable:$true] %s20
      %23 = dma.hbm_to_vmem [thread:$0]  %s0, 128, %s21, [#allocation3]
    $region5: #{tpu_custom_call.1} parent=1 // pred_fallthru
      _
    // Predicated region
    $region6: #{tpu_custom_call.1} parent=1 // pred_check
      _
    $region7: #{tpu_custom_call.1} parent=1 // pred_check_branch
      %25 = sbr.rel (0) target = $region9
    $region8: #{tpu_custom_call.1} parent=1 // pred_region
      %s27 = ssub.s32 64, 64
      %28 = vsyncadd [#allocation6], %s27
      %s30 = sshll.u32 [#allocation5], 4
      %s31 = int_to_ptr.vmem [resolvable:$true] %s30
      %33 = dma.hbm_to_vmem [thread:$0]  %s1, 64, %s31, [#allocation6]
    $region9: #{tpu_custom_call.1} parent=1 // pred_fallthru
      _
    // Predicated region
    $region10: #{tpu_custom_call.1} parent=1 // pred_check
      _
    $region11: #{tpu_custom_call.1} parent=1 // pred_check_branch
      %35 = sbr.rel (0) target = $region13
    $region12: #{tpu_custom_call.1} parent=1 // pred_region
      %s37 = ssub.s32 1024, 1024
      %38 = vsyncadd [#allocation6], %s37
      %s39 = sshll.u32 [#allocation7], 4
      %s40 = int_to_ptr.vmem [resolvable:$true] %s39
      %45 = dma.hbm_to_vmem [thread:$0]  %s2, 1024, %s40, [#allocation6], 64, 64, 4
    $region13: #{tpu_custom_call.1} parent=1 // pred_fallthru
      _
    // Predicated region
    $region14: #{tpu_custom_call.1} parent=1 // pred_check
      _
    $region15: #{tpu_custom_call.1} parent=1 // pred_check_branch
      %47 = sbr.rel (0) target = $region17
    $region16: #{tpu_custom_call.1} parent=1 // pred_region
      %s49 = ssub.s32 1024, 1024
      %50 = vsyncadd [#allocation9], %s49
      %s51 = sshll.u32 [#allocation8], 4
      %s52 = int_to_ptr.vmem [resolvable:$true] %s51
      %57 = dma.hbm_to_vmem [thread:$0]  %s3, 1024, %s52, [#allocation9], 64, 64, 4
    $region17: #{tpu_custom_call.1} parent=1 // pred_fallthru
      _
    // Predicated region
    $region18: #{tpu_custom_call.1} parent=1 // pred_check
      _
    $region19: #{tpu_custom_call.1} parent=1 // pred_check_branch
      %59 = sbr.rel (0) target = $region21
    $region20: #{tpu_custom_call.1} parent=1 // pred_region
      %s61 = ssub.s32 1024, 1024
      %62 = vsyncadd [#allocation9], %s61
      %s63 = sshll.u32 [#allocation10], 4
      %s64 = int_to_ptr.vmem [resolvable:$true] %s63
      %69 = dma.hbm_to_vmem [thread:$0]  %s4, 1024, %s64, [#allocation9], 64, 64, 4
    $region21: #{tpu_custom_call.1} parent=1 // pred_fallthru
      _
    // Predicated region
    $region22: #{tpu_custom_call.1} parent=1 // pred_check
      _
    $region23: #{tpu_custom_call.1} parent=1 // pred_check_branch
      %71 = sbr.rel (0) target = $region25
    $region24: #{tpu_custom_call.1} parent=1 // pred_region
      %72 = dma.done [#allocation3], 128
    $region25: #{tpu_custom_call.1} parent=1 // pred_fallthru
      _
    // Predicated region
    $region26: #{tpu_custom_call.1} parent=1 // pred_check
      _
    $region27: #{tpu_custom_call.1} parent=1 // pred_check_branch
      %74 = sbr.rel (0) target = $region29
    $region28: #{tpu_custom_call.1} parent=1 // pred_region
      %75 = dma.done [#allocation6], 64
    $region29: #{tpu_custom_call.1} parent=1 // pred_fallthru
      _
    // Predicated region
    $region30: #{tpu_custom_call.1} parent=1 // pred_check
      _
    $region31: #{tpu_custom_call.1} parent=1 // pred_check_branch
      %77 = sbr.rel (0) target = $region33
    $region32: #{tpu_custom_call.1} parent=1 // pred_region
      %78 = dma.done [#allocation6], 1024
    $region33: #{tpu_custom_call.1} parent=1 // pred_fallthru
      _
    // Predicated region
    $region34: #{tpu_custom_call.1} parent=1 // pred_check
      _
    $region35: #{tpu_custom_call.1} parent=1 // pred_check_branch
      %80 = sbr.rel (0) target = $region37
    $region36: #{tpu_custom_call.1} parent=1 // pred_region
      %81 = dma.done [#allocation9], 1024
    $region37: #{tpu_custom_call.1} parent=1 // pred_fallthru
      _
    // Predicated region
    $region38: #{tpu_custom_call.1} parent=1 // pred_check
      _
    $region39: #{tpu_custom_call.1} parent=1 // pred_check_branch
      %83 = sbr.rel (0) target = $region41
    $region40: #{tpu_custom_call.1} parent=1 // pred_region
      %84 = dma.done [#allocation9], 1024
    $region41: #{tpu_custom_call.1} parent=1 // pred_fallthru
      _
    %v86 = vld [vmem:[#allocation2] sm:$0xff]
    %v87 = vld [vmem:[#allocation7] sm:$0xf]
    %v88 = vld [vmem:[#allocation7 + $0x4] sm:$0xf]
    %v89 = vld [vmem:[#allocation7 + $0x8] sm:$0xf]
    %v90 = vld [vmem:[#allocation7 + $0xc] sm:$0xf]
    %v91 = vld [vmem:[#allocation7 + $0x10] sm:$0xf]
    %v92 = vld [vmem:[#allocation7 + $0x14] sm:$0xf]
    %v93 = vld [vmem:[#allocation7 + $0x18] sm:$0xf]
    %v94 = vld [vmem:[#allocation7 + $0x1c] sm:$0xf]
    %v95 = vld [vmem:[#allocation7 + $0x20] sm:$0xf]
    %v96 = vld [vmem:[#allocation7 + $0x24] sm:$0xf]
    %v97 = vld [vmem:[#allocation7 + $0x28] sm:$0xf]
    %v98 = vld [vmem:[#allocation7 + $0x2c] sm:$0xf]
    %v99 = vld [vmem:[#allocation7 + $0x30] sm:$0xf]
    %v100 = vld [vmem:[#allocation7 + $0x34] sm:$0xf]
    %v101 = vld [vmem:[#allocation7 + $0x38] sm:$0xf]
    %v102 = vld [vmem:[#allocation7 + $0x3c] sm:$0xf]
    %v103 = vld [vmem:[#allocation5] sm:$0x1]
    %v104 = vpack.c.bf16 %v86, %v86
    %v105 = vlaneseq
    %v106 = vshrl.u32 %v105, 7
    %v107 = vsub.s32 0, %v106
    %v108 = vrot.slane %v103, %v107
    %v125 = vunpack.c.l.b16 %v87
    %v126 = vunpack.c.l.b16 %v88
    %v127 = vunpack.c.l.b16 %v89
    %v128 = vunpack.c.l.b16 %v90
    %v129 = vunpack.c.l.b16 %v91
    %v130 = vunpack.c.l.b16 %v92
    %v131 = vunpack.c.l.b16 %v93
    %v132 = vunpack.c.l.b16 %v94
    %v133 = vunpack.c.l.b16 %v95
    %v134 = vunpack.c.l.b16 %v96
    %v135 = vunpack.c.l.b16 %v97
    %v136 = vunpack.c.l.b16 %v98
    %v137 = vunpack.c.l.b16 %v99
    %v138 = vunpack.c.l.b16 %v100
    %v139 = vunpack.c.l.b16 %v101
    %v140 = vunpack.c.l.b16 %v102
    %v141 = vpack.c.b16 %v126, %v125
    %v142 = vpack.c.b16 %v128, %v127
    %v143 = vpack.c.b16 %v130, %v129
    %v144 = vpack.c.b16 %v132, %v131
    %v145 = vpack.c.b16 %v134, %v133
    %v146 = vpack.c.b16 %v136, %v135
    %v147 = vpack.c.b16 %v138, %v137
    %v148 = vpack.c.b16 %v140, %v139
    %157 = vmatprep.subr.bf16.mxu0 0
    %158 = vmatpush1.bf16.msra.mxu0 %v148
    %159 = vmatprep.subr.bf16.mxu0 0
    %160 = vmatpush1.bf16.msra.mxu0 %v147
    %161 = vmatprep.subr.bf16.mxu0 0
    %162 = vmatpush1.bf16.msra.mxu0 %v146
    %163 = vmatprep.subr.bf16.mxu0 0
    %164 = vmatpush1.bf16.msra.mxu0 %v145
    %165 = vmatprep.subr.bf16.mxu0 0
    %166 = vmatpush1.bf16.msra.mxu0 %v144
    %167 = vmatprep.subr.bf16.mxu0 0
    %168 = vmatpush1.bf16.msra.mxu0 %v143
    %169 = vmatprep.subr.bf16.mxu0 0
    %170 = vmatpush1.bf16.msra.mxu0 %v142
    %171 = vmatprep.subr.bf16.mxu0 0
    %172 = vmatpush1.bf16.msra.mxu0 %v141
    %173 = vmatprep.subr.bf16.mxu0 0
    %174 = vmatpush2.bf16.msra.mxu0 0
    %175 = vmatprep.subr.bf16.mxu0 0
    %176 = vmatpush2.bf16.msra.mxu0 0
    %177 = vmatprep.subr.bf16.mxu0 0
    %178 = vmatpush2.bf16.msra.mxu0 0
    %179 = vmatprep.subr.bf16.mxu0 0
    %180 = vmatpush2.bf16.msra.mxu0 0
    %181 = vmatprep.subr.bf16.mxu0 0
    %182 = vmatpush2.bf16.msra.mxu0 0
    %183 = vmatprep.subr.bf16.mxu0 0
    %184 = vmatpush2.bf16.msra.mxu0 0
    %185 = vmatprep.subr.bf16.mxu0 0
    %186 = vmatpush2.bf16.msra.mxu0 0
    %187 = vmatprep.subr.bf16.mxu0 0
    %188 = vmatpush2.bf16.msra.mxu0 0
    %189 = vmatprep.mubr.bf16.mxu0 0
    %190 = vmatmul.mubr.bf16.gmra.mxu0 %v104
    %v191 = vpop.f32.mrf.mxu0
    %v192 = vadd.f32 %v108, %v191
    %v193 = vpop.f32.mrf.mxu0
    %v194 = vpop.f32.mrf.mxu0
    %v195 = vpop.f32.mrf.mxu0
    %196 = vdwg.mxu0
    %v197 = vtanh.pop %v192
    %v198 = vld [vmem:[#allocation8] sm:$0xf]
    %v199 = vld [vmem:[#allocation8 + $0x4] sm:$0xf]
    %v200 = vld [vmem:[#allocation8 + $0x8] sm:$0xf]
    %v201 = vld [vmem:[#allocation8 + $0xc] sm:$0xf]
    %v202 = vld [vmem:[#allocation8 + $0x10] sm:$0xf]
    %v203 = vld [vmem:[#allocation8 + $0x14] sm:$0xf]
    %v204 = vld [vmem:[#allocation8 + $0x18] sm:$0xf]
    %v205 = vld [vmem:[#allocation8 + $0x1c] sm:$0xf]
    %v206 = vld [vmem:[#allocation8 + $0x20] sm:$0xf]
    %v207 = vld [vmem:[#allocation8 + $0x24] sm:$0xf]
    %v208 = vld [vmem:[#allocation8 + $0x28] sm:$0xf]
    %v209 = vld [vmem:[#allocation8 + $0x2c] sm:$0xf]
    %v210 = vld [vmem:[#allocation8 + $0x30] sm:$0xf]
    %v211 = vld [vmem:[#allocation8 + $0x34] sm:$0xf]
    %v212 = vld [vmem:[#allocation8 + $0x38] sm:$0xf]
    %v213 = vld [vmem:[#allocation8 + $0x3c] sm:$0xf]
    %v214 = vld [vmem:[#allocation5 + $0x1] sm:$0x1]
    %v215 = vpack.c.bf16 %v197, %v197
    %v216 = vlaneseq
    %v217 = vshrl.u32 %v216, 7
    %v218 = vsub.s32 0, %v217
    %v219 = vrot.slane %v214, %v218
    %v236 = vunpack.c.l.b16 %v198
    %v237 = vunpack.c.l.b16 %v199
    %v238 = vunpack.c.l.b16 %v200
    %v239 = vunpack.c.l.b16 %v201
    %v240 = vunpack.c.l.b16 %v202
    %v241 = vunpack.c.l.b16 %v203
    %v242 = vunpack.c.l.b16 %v204
    %v243 = vunpack.c.l.b16 %v205
    %v244 = vunpack.c.l.b16 %v206
    %v245 = vunpack.c.l.b16 %v207
    %v246 = vunpack.c.l.b16 %v208
    %v247 = vunpack.c.l.b16 %v209
    %v248 = vunpack.c.l.b16 %v210
    %v249 = vunpack.c.l.b16 %v211
    %v250 = vunpack.c.l.b16 %v212
    %v251 = vunpack.c.l.b16 %v213
    %v252 = vpack.c.b16 %v237, %v236
    %v253 = vpack.c.b16 %v239, %v238
    %v254 = vpack.c.b16 %v241, %v240
    %v255 = vpack.c.b16 %v243, %v242
    %v256 = vpack.c.b16 %v245, %v244
    %v257 = vpack.c.b16 %v247, %v246
    %v258 = vpack.c.b16 %v249, %v248
    %v259 = vpack.c.b16 %v251, %v250
    %268 = vmatprep.subr.bf16.mxu0 0
    %269 = vmatpush1.bf16.msra.mxu0 %v259
    %270 = vmatprep.subr.bf16.mxu0 0
    %271 = vmatpush1.bf16.msra.mxu0 %v258
    %272 = vmatprep.subr.bf16.mxu0 0
    %273 = vmatpush1.bf16.msra.mxu0 %v257
    %274 = vmatprep.subr.bf16.mxu0 0
    %275 = vmatpush1.bf16.msra.mxu0 %v256
    %276 = vmatprep.subr.bf16.mxu0 0
    %277 = vmatpush1.bf16.msra.mxu0 %v255
    %278 = vmatprep.subr.bf16.mxu0 0
    %279 = vmatpush1.bf16.msra.mxu0 %v254
    %280 = vmatprep.subr.bf16.mxu0 0
    %281 = vmatpush1.bf16.msra.mxu0 %v253
    %282 = vmatprep.subr.bf16.mxu0 0
    %283 = vmatpush1.bf16.msra.mxu0 %v252
    %284 = vmatprep.subr.bf16.mxu0 0
    %285 = vmatpush2.bf16.msra.mxu0 0
    %286 = vmatprep.subr.bf16.mxu0 0
    %287 = vmatpush2.bf16.msra.mxu0 0
    %288 = vmatprep.subr.bf16.mxu0 0
    %289 = vmatpush2.bf16.msra.mxu0 0
    %290 = vmatprep.subr.bf16.mxu0 0
    %291 = vmatpush2.bf16.msra.mxu0 0
    %292 = vmatprep.subr.bf16.mxu0 0
    %293 = vmatpush2.bf16.msra.mxu0 0
    %294 = vmatprep.subr.bf16.mxu0 0
    %295 = vmatpush2.bf16.msra.mxu0 0
    %296 = vmatprep.subr.bf16.mxu0 0
    %297 = vmatpush2.bf16.msra.mxu0 0
    %298 = vmatprep.subr.bf16.mxu0 0
    %299 = vmatpush2.bf16.msra.mxu0 0
    %300 = vmatprep.mubr.bf16.mxu0 0
    %301 = vmatmul.mubr.bf16.gmra.mxu0 %v215
    %v302 = vpop.f32.mrf.mxu0
    %v303 = vadd.f32 %v219, %v302
    %v304 = vpop.f32.mrf.mxu0
    %v305 = vpop.f32.mrf.mxu0
    %v306 = vpop.f32.mrf.mxu0
    %307 = vdwg.mxu0
    %v308 = vtanh.pop %v303
    %v309 = vld [vmem:[#allocation10] sm:$0xf]
    %v310 = vld [vmem:[#allocation10 + $0x4] sm:$0xf]
    %v311 = vld [vmem:[#allocation10 + $0x8] sm:$0xf]
    %v312 = vld [vmem:[#allocation10 + $0xc] sm:$0xf]
    %v313 = vld [vmem:[#allocation10 + $0x10] sm:$0xf]
    %v314 = vld [vmem:[#allocation10 + $0x14] sm:$0xf]
    %v315 = vld [vmem:[#allocation10 + $0x18] sm:$0xf]
    %v316 = vld [vmem:[#allocation10 + $0x1c] sm:$0xf]
    %v317 = vld [vmem:[#allocation10 + $0x20] sm:$0xf]
    %v318 = vld [vmem:[#allocation10 + $0x24] sm:$0xf]
    %v319 = vld [vmem:[#allocation10 + $0x28] sm:$0xf]
    %v320 = vld [vmem:[#allocation10 + $0x2c] sm:$0xf]
    %v321 = vld [vmem:[#allocation10 + $0x30] sm:$0xf]
    %v322 = vld [vmem:[#allocation10 + $0x34] sm:$0xf]
    %v323 = vld [vmem:[#allocation10 + $0x38] sm:$0xf]
    %v324 = vld [vmem:[#allocation10 + $0x3c] sm:$0xf]
    %v325 = vld [vmem:[#allocation5 + $0x2] sm:$0x1]
    %v326 = vpack.c.bf16 %v308, %v308
    %v327 = vlaneseq
    %v328 = vshrl.u32 %v327, 7
    %v329 = vsub.s32 0, %v328
    %v330 = vrot.slane %v325, %v329
    %v347 = vunpack.c.l.b16 %v309
    %v348 = vunpack.c.l.b16 %v310
    %v349 = vunpack.c.l.b16 %v311
    %v350 = vunpack.c.l.b16 %v312
    %v351 = vunpack.c.l.b16 %v313
    %v352 = vunpack.c.l.b16 %v314
    %v353 = vunpack.c.l.b16 %v315
    %v354 = vunpack.c.l.b16 %v316
    %v355 = vunpack.c.l.b16 %v317
    %v356 = vunpack.c.l.b16 %v318
    %v357 = vunpack.c.l.b16 %v319
    %v358 = vunpack.c.l.b16 %v320
    %v359 = vunpack.c.l.b16 %v321
    %v360 = vunpack.c.l.b16 %v322
    %v361 = vunpack.c.l.b16 %v323
    %v362 = vunpack.c.l.b16 %v324
    %v363 = vpack.c.b16 %v348, %v347
    %v364 = vpack.c.b16 %v350, %v349
    %v365 = vpack.c.b16 %v352, %v351
    %v366 = vpack.c.b16 %v354, %v353
    %v367 = vpack.c.b16 %v356, %v355
    %v368 = vpack.c.b16 %v358, %v357
    %v369 = vpack.c.b16 %v360, %v359
    %v370 = vpack.c.b16 %v362, %v361
    %379 = vmatprep.subr.bf16.mxu0 0
    %380 = vmatpush1.bf16.msra.mxu0 %v370
    %381 = vmatprep.subr.bf16.mxu0 0
    %382 = vmatpush1.bf16.msra.mxu0 %v369
    %383 = vmatprep.subr.bf16.mxu0 0
    %384 = vmatpush1.bf16.msra.mxu0 %v368
    %385 = vmatprep.subr.bf16.mxu0 0
    %386 = vmatpush1.bf16.msra.mxu0 %v367
    %387 = vmatprep.subr.bf16.mxu0 0
    %388 = vmatpush1.bf16.msra.mxu0 %v366
    %389 = vmatprep.subr.bf16.mxu0 0
    %390 = vmatpush1.bf16.msra.mxu0 %v365
    %391 = vmatprep.subr.bf16.mxu0 0
    %392 = vmatpush1.bf16.msra.mxu0 %v364
    %393 = vmatprep.subr.bf16.mxu0 0
    %394 = vmatpush1.bf16.msra.mxu0 %v363
    %395 = vmatprep.subr.bf16.mxu0 0
    %396 = vmatpush2.bf16.msra.mxu0 0
    %397 = vmatprep.subr.bf16.mxu0 0
    %398 = vmatpush2.bf16.msra.mxu0 0
    %399 = vmatprep.subr.bf16.mxu0 0
    %400 = vmatpush2.bf16.msra.mxu0 0
    %401 = vmatprep.subr.bf16.mxu0 0
    %402 = vmatpush2.bf16.msra.mxu0 0
    %403 = vmatprep.subr.bf16.mxu0 0
    %404 = vmatpush2.bf16.msra.mxu0 0
    %405 = vmatprep.subr.bf16.mxu0 0
    %406 = vmatpush2.bf16.msra.mxu0 0
    %407 = vmatprep.subr.bf16.mxu0 0
    %408 = vmatpush2.bf16.msra.mxu0 0
    %409 = vmatprep.subr.bf16.mxu0 0
    %410 = vmatpush2.bf16.msra.mxu0 0
    %411 = vmatprep.mubr.bf16.mxu0 0
    %412 = vmatmul.mubr.bf16.gmra.mxu0 %v326
    %v413 = vpop.f32.mrf.mxu0
    %v414 = vadd.f32 %v330, %v413
    %v415 = vpop.f32.mrf.mxu0
    %v416 = vpop.f32.mrf.mxu0
    %v417 = vpop.f32.mrf.mxu0
    %418 = vdwg.mxu0
    %v419 = vtanh.pop %v414
    %vm420 = vcmask 64512
    %421 = vst.msk [vmem:[#allocation11] sm:$0xff] %vm420, %v419
    // Predicated region
    $region42: #{tpu_custom_call.1} parent=1 // pred_check
      _
    $region43: #{tpu_custom_call.1} parent=1 // pred_check_branch
      %423 = sbr.rel (0) target = $region45
    $region44: #{tpu_custom_call.1} parent=1 // pred_region
      %s425 = ssub.s32 128, 128
      %426 = vsyncadd [#allocation4], %s425
      %s428 = sshll.u32 [#allocation11], 4
      %s429 = int_to_ptr.vmem [resolvable:$true] %s428
      %431 = dma.vmem_to_hbm [thread:$0]  %s429, 128, %s5, [#allocation4]
    $region45: #{tpu_custom_call.1} parent=1 // pred_fallthru
      _
    // Predicated region
    $region46: #{tpu_custom_call.1} parent=1 // pred_check
      _
    $region47: #{tpu_custom_call.1} parent=1 // pred_check_branch
      %433 = sbr.rel (0) target = $region49
    $region48: #{tpu_custom_call.1} parent=1 // pred_region
      %434 = dma.done [#allocation4], 128
    $region49: #{tpu_custom_call.1} parent=1 // pred_fallthru
      _
    %435 = vsyncpa [#allocation3], 1
    %436 = vsyncpa [#allocation6], 1
    %437 = vsyncpa [#allocation9], 1
    %438 = vsyncpa [#allocation4], 1

</llo_original>
